<compile_context>
chip_gen: v7x
topology: tpu7x:2x2x1
jax: 0.10.0
libtpu: 0.0.40
codegen_flags: <defaults>
</compile_context>

<pallas_src>
import functools

import jax
import jax.numpy as jnp
from jax import lax
from jax.experimental import pallas as pl
from jax.experimental.pallas import tpu as pltpu

EPS = 1e-5
SUBLANE = 8


def _round_up(n, m):
    return (n + m - 1) // m * m


def _patch_embed_kernel(x_ref, w_ref, b_ref, g_ref, beta_ref, o_ref, *, inv_e):
    # x_ref: (TN, K) bf16   w_ref: (K, E) bf16
    # b/g/beta: (1, E) f32  o_ref: (TN, E) f32
    x = x_ref[...]
    w = w_ref[...]
    # Projection on the MXU (bf16 operands, f32 accumulation) + bias.
    y = jnp.dot(x, w, preferred_element_type=jnp.float32) + b_ref[...]

    # LayerNorm over E in f32, sum / sum-of-squares form (row reductions go to
    # the XLU slot, rsqrt to the EUP slot; VPU chain stays short).
    mean = jnp.sum(y, axis=-1, keepdims=True) * inv_e
    var = jnp.sum(y * y, axis=-1, keepdims=True) * inv_e - mean * mean
    s = lax.rsqrt(var + EPS)
    # Fold gamma into the scale: out = y * (s*g) + (beta - mean*(s*g)).
    sg = s * g_ref[...]
    o_ref[...] = (y * sg + (beta_ref[...] - mean * sg)).astype(o_ref.dtype)


def patch_embed(x, conv_w, conv_b, ln_g, ln_b, patch_size, *, row_tile=1024):
    """x: (B, C, H, W) float32. conv_w: (E, C, ph, pw). Returns (B, Hp*Wp, E) f32."""
    B, C, H, W = x.shape
    ph = pw = patch_size
    Hp, Wp = H // ph, W // pw
    E = conv_w.shape[0]
    K = C * ph * pw
    N = B * Hp * Wp

    # Row tile: sublane-aligned, capped so the (parallel) grid has >= 2 steps
    # whenever N > SUBLANE -- keeps both TensorCores busy on v7x.
    cap = max(SUBLANE, _round_up(pl.cdiv(N, 2), SUBLANE))
    row_tile = max(SUBLANE, min(_round_up(row_tile, SUBLANE), cap))
    grid = (pl.cdiv(N, row_tile),)

    # Patchify (plain-JAX glue; XLA fuses reshape/transpose/cast into one copy):
    # (B,C,Hp,ph,Wp,pw) -> (B,Hp,Wp,C,ph,pw) -> (N, K), emitted in bf16.
    patches = x.reshape(B, C, Hp, ph, Wp, pw)
    patches = patches.transpose(0, 2, 4, 1, 3, 5).reshape(N, K)
    patches = patches.astype(jnp.bfloat16)

    # Conv weight -> matmul weight (K, E) in bf16; LN/bias params stay f32.
    w_mat = conv_w.reshape(E, K).T.astype(jnp.bfloat16)
    b_row = conv_b.reshape(1, E).astype(jnp.float32)
    g_row = ln_g.reshape(1, E).astype(jnp.float32)
    beta_row = ln_b.reshape(1, E).astype(jnp.float32)

    cost = pl.CostEstimate(
        flops=int(2 * N * K * E + 10 * N * E),
        transcendentals=0,
        bytes_accessed=int(2 * (N * K + K * E) + 4 * (3 * E + N * E)),
    )

    out = pl.pallas_call(
        functools.partial(_patch_embed_kernel, inv_e=1.0 / float(E)),
        out_shape=jax.ShapeDtypeStruct((N, E), jnp.float32),
        grid_spec=pltpu.PrefetchScalarGridSpec(
            num_scalar_prefetch=0,
            grid=grid,
            in_specs=[
                pl.BlockSpec((row_tile, K), lambda i: (i, 0)),
                pl.BlockSpec((K, E), lambda i: (0, 0)),
                pl.BlockSpec((1, E), lambda i: (0, 0)),
                pl.BlockSpec((1, E), lambda i: (0, 0)),
                pl.BlockSpec((1, E), lambda i: (0, 0)),
            ],
            out_specs=pl.BlockSpec((row_tile, E), lambda i: (i, 0)),
        ),
        compiler_params=pltpu.CompilerParams(
            dimension_semantics=("parallel",)),
        cost_estimate=cost,
    )(patches, w_mat, b_row, g_row, beta_row)

    # (N, E) -> (B, Hp*Wp, E) is a free row-major reshape (no slice, no copy).
    return out.reshape(B, Hp * Wp, E)


def _reference(x, conv_w, conv_b, ln_g, ln_b, patch_size):
    # Pure-JAX (f32) reference for sanity checking.
    y = lax.conv_general_dilated(
        x, conv_w, window_strides=(patch_size, patch_size), padding="VALID",
        dimension_numbers=("NCHW", "OIHW", "NCHW"))
    y = y + conv_b[None, :, None, None]
    B, E, Hp, Wp = y.shape
    y = y.reshape(B, E, Hp * Wp).transpose(0, 2, 1)
    mean = jnp.mean(y, axis=-1, keepdims=True)
    var = jnp.mean((y - mean) ** 2, axis=-1, keepdims=True)
    return (y - mean) / jnp.sqrt(var + EPS) * ln_g + ln_b


if __name__ == "__main__":
    # Module config: img_size=16, patch_size=4, in_chans=4, embed_dim=32
    B, C, H, W = 2, 4, 16, 16
    patch_size = 4
    embed_dim = 32

    key = jax.random.PRNGKey(0)
    kx, kw, kb, kg, kbeta = jax.random.split(key, 5)

    x = jax.random.normal(kx, (B, C, H, W), dtype=jnp.float32)
    conv_w = 0.1 * jax.random.normal(kw, (embed_dim, C, patch_size, patch_size),
                                     dtype=jnp.float32)
    conv_b = 0.1 * jax.random.normal(kb, (embed_dim,), dtype=jnp.float32)
    ln_g = jnp.ones((embed_dim,), dtype=jnp.float32) \
        + 0.05 * jax.random.normal(kg, (embed_dim,), dtype=jnp.float32)
    ln_b = 0.05 * jax.random.normal(kbeta, (embed_dim,), dtype=jnp.float32)

    out = patch_embed(x, conv_w, conv_b, ln_g, ln_b, patch_size)
    out = jax.block_until_ready(out)

    ref = _reference(x, conv_w, conv_b, ln_g, ln_b, patch_size)
    assert out.shape == (B, (H // patch_size) * (W // patch_size), embed_dim)
    # bf16 operands -> relaxed tolerance vs. the f32 reference.
    assert jnp.allclose(out, ref, atol=3e-2, rtol=3e-2)

    print("KERNEL_OK")
</pallas_src>

<mosaic_0001>
module attributes {stable_mosaic.version = 11 : i64} {
  func.func @_patch_embed_kernel(%arg0: i32, %arg1: memref<16x64xbf16, #tpu.memory_space<vmem>>, %arg2: memref<64x32xbf16, #tpu.memory_space<vmem>>, %arg3: memref<1x32xf32, #tpu.memory_space<vmem>>, %arg4: memref<1x32xf32, #tpu.memory_space<vmem>>, %arg5: memref<1x32xf32, #tpu.memory_space<vmem>>, %arg6: memref<16x32xf32, #tpu.memory_space<vmem>>) attributes {dimension_semantics = [#tpu.dimension_semantics<parallel>], iteration_bounds = array<i64: 2>, scalar_prefetch = 0 : i64, scratch_operands = 0 : i64, tpu.core_type = #tpu.core_type<tc>, window_params = [{transform_indices = @transform_0, window_bounds = array<i64: 16, 64>}, {pipeline_mode = #tpu.pipeline_mode<synchronous>, transform_indices = @transform_1, window_bounds = array<i64: 64, 32>}, {pipeline_mode = #tpu.pipeline_mode<synchronous>, transform_indices = @transform_2, window_bounds = array<i64: 1, 32>}, {pipeline_mode = #tpu.pipeline_mode<synchronous>, transform_indices = @transform_3, window_bounds = array<i64: 1, 32>}, {pipeline_mode = #tpu.pipeline_mode<synchronous>, transform_indices = @transform_4, window_bounds = array<i64: 1, 32>}, {transform_indices = @transform_5, window_bounds = array<i64: 16, 32>}]} {
    %c0 = arith.constant 0 : index
    %c0_0 = arith.constant 0 : index
    %0 = vector.load %arg1[%c0, %c0_0] : memref<16x64xbf16, #tpu.memory_space<vmem>>, vector<16x64xbf16>
    %c0_1 = arith.constant 0 : index
    %c0_2 = arith.constant 0 : index
    %1 = vector.load %arg2[%c0_1, %c0_2] : memref<64x32xbf16, #tpu.memory_space<vmem>>, vector<64x32xbf16>
    %cst = arith.constant dense<0.000000e+00> : vector<16x32xf32>
    %2 = tpu.matmul %0, %1, %cst {dimension_numbers = #tpu.dot_dimension_numbers<[1], [0], [0], [1], [0, 0, 1, 1], [], []>} : vector<16x64xbf16>, vector<64x32xbf16>, vector<16x32xf32> -> vector<16x32xf32>
    %c0_3 = arith.constant 0 : index
    %c0_4 = arith.constant 0 : index
    %3 = vector.load %arg3[%c0_3, %c0_4] : memref<1x32xf32, #tpu.memory_space<vmem>>, vector<1x32xf32>
    %4 = vector.broadcast %3 : vector<1x32xf32> to vector<16x32xf32>
    %5 = arith.addf %2, %4 : vector<16x32xf32>
    %cst_5 = arith.constant dense<0.000000e+00> : vector<16xf32>
    %6 = vector.multi_reduction <add>, %5, %cst_5 [1] : vector<16x32xf32> to vector<16xf32>
    %7 = vector.shape_cast %6 : vector<16xf32> to vector<16x1xf32>
    %cst_6 = arith.constant 3.125000e-02 : f32
    %8 = vector.broadcast %cst_6 : f32 to vector<16x1xf32>
    %9 = arith.mulf %7, %8 : vector<16x1xf32>
    %10 = arith.mulf %5, %5 : vector<16x32xf32>
    %cst_7 = arith.constant dense<0.000000e+00> : vector<16xf32>
    %11 = vector.multi_reduction <add>, %10, %cst_7 [1] : vector<16x32xf32> to vector<16xf32>
    %12 = vector.shape_cast %11 : vector<16xf32> to vector<16x1xf32>
    %cst_8 = arith.constant 3.125000e-02 : f32
    %13 = vector.broadcast %cst_8 : f32 to vector<16x1xf32>
    %14 = arith.mulf %12, %13 : vector<16x1xf32>
    %15 = arith.mulf %9, %9 : vector<16x1xf32>
    %16 = arith.subf %14, %15 : vector<16x1xf32>
    %cst_9 = arith.constant 9.99999974E-6 : f32
    %17 = vector.broadcast %cst_9 : f32 to vector<16x1xf32>
    %18 = arith.addf %16, %17 : vector<16x1xf32>
    %19 = math.rsqrt %18 : vector<16x1xf32>
    %c0_10 = arith.constant 0 : index
    %c0_11 = arith.constant 0 : index
    %20 = vector.load %arg4[%c0_10, %c0_11] : memref<1x32xf32, #tpu.memory_space<vmem>>, vector<1x32xf32>
    %21 = vector.broadcast %19 : vector<16x1xf32> to vector<16x32xf32>
    %22 = vector.broadcast %20 : vector<1x32xf32> to vector<16x32xf32>
    %23 = arith.mulf %21, %22 : vector<16x32xf32>
    %24 = arith.mulf %5, %23 : vector<16x32xf32>
    %c0_12 = arith.constant 0 : index
    %c0_13 = arith.constant 0 : index
    %25 = vector.load %arg5[%c0_12, %c0_13] : memref<1x32xf32, #tpu.memory_space<vmem>>, vector<1x32xf32>
    %26 = vector.broadcast %9 : vector<16x1xf32> to vector<16x32xf32>
    %27 = arith.mulf %26, %23 : vector<16x32xf32>
    %28 = vector.broadcast %25 : vector<1x32xf32> to vector<16x32xf32>
    %29 = arith.subf %28, %27 : vector<16x32xf32>
    %30 = arith.addf %24, %29 : vector<16x32xf32>
    %c0_14 = arith.constant 0 : index
    %c0_15 = arith.constant 0 : index
    %31 = vector.load %arg6[%c0_14, %c0_15] : memref<16x32xf32, #tpu.memory_space<vmem>>, vector<16x32xf32>
    tpu.vector_store %arg6[%c0_14, %c0_15], %30 {strides = array<i32>} : memref<16x32xf32, #tpu.memory_space<vmem>>, vector<16x32xf32>,
    return
  }
  func.func @transform_0(%arg0: i32) -> (i32, i32) {
    %c0_i32 = arith.constant 0 : i32
    %c0_i32_0 = arith.constant 0 : i32
    return %arg0, %c0_i32 : i32, i32
  }
  func.func @transform_1(%arg0: i32) -> (i32, i32) {
    %c0_i32 = arith.constant 0 : i32
    %c0_i32_0 = arith.constant 0 : i32
    %c0_i32_1 = arith.constant 0 : i32
    return %c0_i32, %c0_i32_0 : i32, i32
  }
  func.func @transform_2(%arg0: i32) -> (i32, i32) {
    %c0_i32 = arith.constant 0 : i32
    %c0_i32_0 = arith.constant 0 : i32
    %c0_i32_1 = arith.constant 0 : i32
    return %c0_i32, %c0_i32_0 : i32, i32
  }
  func.func @transform_3(%arg0: i32) -> (i32, i32) {
    %c0_i32 = arith.constant 0 : i32
    %c0_i32_0 = arith.constant 0 : i32
    %c0_i32_1 = arith.constant 0 : i32
    return %c0_i32, %c0_i32_0 : i32, i32
  }
  func.func @transform_4(%arg0: i32) -> (i32, i32) {
    %c0_i32 = arith.constant 0 : i32
    %c0_i32_0 = arith.constant 0 : i32
    %c0_i32_1 = arith.constant 0 : i32
    return %c0_i32, %c0_i32_0 : i32, i32
  }
  func.func @transform_5(%arg0: i32) -> (i32, i32) {
    %c0_i32 = arith.constant 0 : i32
    %c0_i32_0 = arith.constant 0 : i32
    return %arg0, %c0_i32 : i32, i32
  }
}

</mosaic_0001>

<llo_original>
// kernel: tpu_custom_call.1
$region0: #{tpu_custom_call.1}
  #allocation0 [shape = 'u32[]', space=smem, size = 0x4, offset = 0x4, fixed_abs, tag = 'smem constant byte address 0x4 - core index']
  #allocation1 [shape = 'u32[144,128]{1,0:T(1,128)}', space=vmem, size = 0x12000, scoped, tag = 'internal scratch']
  %s0 = inlined_call_operand.vmem [shape: bf16[32,64], index: 0, kind: input, shape index: {}]
  %s1 = inlined_call_operand.vmem [shape: bf16[64,32], index: 1, kind: input, shape index: {}]
  %s2 = inlined_call_operand.vmem [shape: f32[1,32], index: 2, kind: input, shape index: {}]
  %s3 = inlined_call_operand.vmem [shape: f32[1,32], index: 3, kind: input, shape index: {}]
  %s4 = inlined_call_operand.vmem [shape: f32[1,32], index: 4, kind: input, shape index: {}]
  %s5 = inlined_call_operand.hbm [shape: f32[32,32], index: 5, kind: output, shape index: {}]
  %s6 = sld [smem:[#allocation0]]
  $region53: #{tpu_custom_call.1} parent=0
    _
  %s8 = ssub.s32 1, %s6
  %s9 = scalar_select 0, %s8, %s6
  $region1: #{tpu_custom_call.1} parent=0
    #allocation2 [shape = 'u8[16384]{0}', space=vmem, size = 0x4000, scoped, tag = 'output window, operand 0']
    #allocation3 [shape = 's32[2]{0}', space=sflag, size = 0x8, scoped, tag = 'scoped memory for tpu_custom_call.1']
    %10 = vsyncpa [#allocation3], 0
    %s11 = scalar_lea.sflag [#allocation3], 1
    %12 = vsyncpa %s11, 0
    loop: start=0, step=1, limit=4
    $region2: #{tpu_custom_call.1} parent=1 // loop_pre_header
      _
    $region3: #{tpu_custom_call.1} parent=1 // loop_header
      %s14 = sphi 0, %s18
      %p15 = scmp.ge.s32.totalorder %s14, 4
      %s24 = sphi 0, %s26
      %s27 = sphi 0, %s24
      %s28 = sphi 0, %s27
      %s44 = sphi 0, %s28
      %s48 = sphi 0, %s48
      %s50 = sphi 0, %s48
      %s51 = sphi 0, %s50
      %s65 = sphi 0, %s51
      %s69 = sphi 0, %s69
      %s71 = sphi 0, %s69
      %s72 = sphi 0, %s71
      %s86 = sphi 0, %s72
      %s90 = sphi 0, %s90
      %s92 = sphi 0, %s90
      %s93 = sphi 0, %s92
      %s107 = sphi 0, %s93
      %s111 = sphi 0, %s111
      %s113 = sphi 0, %s111
      %s114 = sphi 0, %s113
      %s128 = sphi 0, %s114
      %s134 = sphi 0, %s136
      %s137 = sphi 0, %s134
      %s138 = sphi 0, %s137
      %s154 = sphi 0, %s138
    $region4: #{tpu_custom_call.1} parent=1 // loop_header_branch
      %17 = sbr.rel (%p15) target = $region8
    $region5: #{tpu_custom_call.1} parent=1 // loop_body
      %s19 = ssub.s32 %s14, 1
      %s20 = ssub.s32 %s14, 2
      %s21 = sadd.s32 %s14, 1
      %s22 = ssub.s32 %s14, %s21
      %p23 = scmp.eq.s32.totalorder %s22, 0
      %s25 = sadd.s32 %s24, 1
      %s26 = scalar_select %p23, %s24, %s25
      %p29 = pneg %p23
      %p30 = scmp.eq.s32.totalorder %s14, 1
      %p31 = por %p29, %p30
      %p32 = scmp.ne.s32.totalorder %s24, %s27
      %p33 = scmp.eq.s32.totalorder %s14, 0
      %p34 = por %p32, %p33
      %p35 = scmp.ne.s32.totalorder %s24, %s27
      %p36 = scmp.eq.s32.totalorder %s19, 1
      %p37 = por %p35, %p36
      %p38 = scmp.ne.s32.totalorder %s27, %s28
      %p39 = scmp.eq.s32.totalorder %s19, 0
      %p40 = por %p38, %p39
      %p41 = scmp.ne.s32.totalorder %s27, %s28
      %p42 = scmp.eq.s32.totalorder %s20, 1
      %p43 = por %p41, %p42
      %p45 = scmp.ne.s32.totalorder %s28, %s44
      %p46 = scmp.eq.s32.totalorder %s20, 0
      %p47 = por %p45, %p46
      %s49 = sadd.s32 %s48, 1
      %p52 = scmp.eq.s32.totalorder %s14, 1
      %p53 = scmp.ne.s32.totalorder %s48, %s50
      %p54 = scmp.eq.s32.totalorder %s14, 0
      %p55 = por %p53, %p54
      %p56 = scmp.ne.s32.totalorder %s48, %s50
      %p57 = scmp.eq.s32.totalorder %s19, 1
      %p58 = por %p56, %p57
      %p59 = scmp.ne.s32.totalorder %s50, %s51
      %p60 = scmp.eq.s32.totalorder %s19, 0
      %p61 = por %p59, %p60
      %p62 = scmp.ne.s32.totalorder %s50, %s51
      %p63 = scmp.eq.s32.totalorder %s20, 1
      %p64 = por %p62, %p63
      %p66 = scmp.ne.s32.totalorder %s51, %s65
      %p67 = scmp.eq.s32.totalorder %s20, 0
      %p68 = por %p66, %p67
      %s70 = sadd.s32 %s69, 1
      %p73 = scmp.eq.s32.totalorder %s14, 1
      %p74 = scmp.ne.s32.totalorder %s69, %s71
      %p75 = scmp.eq.s32.totalorder %s14, 0
      %p76 = por %p74, %p75
      %p77 = scmp.ne.s32.totalorder %s69, %s71
      %p78 = scmp.eq.s32.totalorder %s19, 1
      %p79 = por %p77, %p78
      %p80 = scmp.ne.s32.totalorder %s71, %s72
      %p81 = scmp.eq.s32.totalorder %s19, 0
      %p82 = por %p80, %p81
      %p83 = scmp.ne.s32.totalorder %s71, %s72
      %p84 = scmp.eq.s32.totalorder %s20, 1
      %p85 = por %p83, %p84
      %p87 = scmp.ne.s32.totalorder %s72, %s86
      %p88 = scmp.eq.s32.totalorder %s20, 0
      %p89 = por %p87, %p88
      %s91 = sadd.s32 %s90, 1
      %p94 = scmp.eq.s32.totalorder %s14, 1
      %p95 = scmp.ne.s32.totalorder %s90, %s92
      %p96 = scmp.eq.s32.totalorder %s14, 0
      %p97 = por %p95, %p96
      %p98 = scmp.ne.s32.totalorder %s90, %s92
      %p99 = scmp.eq.s32.totalorder %s19, 1
      %p100 = por %p98, %p99
      %p101 = scmp.ne.s32.totalorder %s92, %s93
      %p102 = scmp.eq.s32.totalorder %s19, 0
      %p103 = por %p101, %p102
      %p104 = scmp.ne.s32.totalorder %s92, %s93
      %p105 = scmp.eq.s32.totalorder %s20, 1
      %p106 = por %p104, %p105
      %p108 = scmp.ne.s32.totalorder %s93, %s107
      %p109 = scmp.eq.s32.totalorder %s20, 0
      %p110 = por %p108, %p109
      %s112 = sadd.s32 %s111, 1
      %p115 = scmp.eq.s32.totalorder %s14, 1
      %p116 = scmp.ne.s32.totalorder %s111, %s113
      %p117 = scmp.eq.s32.totalorder %s14, 0
      %p118 = por %p116, %p117
      %p119 = scmp.ne.s32.totalorder %s111, %s113
      %p120 = scmp.eq.s32.totalorder %s19, 1
      %p121 = por %p119, %p120
      %p122 = scmp.ne.s32.totalorder %s113, %s114
      %p123 = scmp.eq.s32.totalorder %s19, 0
      %p124 = por %p122, %p123
      %p125 = scmp.ne.s32.totalorder %s113, %s114
      %p126 = scmp.eq.s32.totalorder %s20, 1
      %p127 = por %p125, %p126
      %p129 = scmp.ne.s32.totalorder %s114, %s128
      %p130 = scmp.eq.s32.totalorder %s20, 0
      %p131 = por %p129, %p130
      %s132 = ssub.s32 %s14, %s21
      %p133 = scmp.eq.s32.totalorder %s132, 0
      %s135 = sadd.s32 %s134, 1
      %s136 = scalar_select %p133, %s134, %s135
      %p139 = pneg %p133
      %p140 = scmp.eq.s32.totalorder %s14, 1
      %p141 = por %p139, %p140
      %p142 = scmp.ne.s32.totalorder %s134, %s137
      %p143 = scmp.eq.s32.totalorder %s14, 0
      %p144 = por %p142, %p143
      %p145 = scmp.ne.s32.totalorder %s134, %s137
      %p146 = scmp.eq.s32.totalorder %s19, 1
      %p147 = por %p145, %p146
      %p148 = scmp.ne.s32.totalorder %s137, %s138
      %p149 = scmp.eq.s32.totalorder %s19, 0
      %p150 = por %p148, %p149
      %p151 = scmp.ne.s32.totalorder %s137, %s138
      %p152 = scmp.eq.s32.totalorder %s20, 1
      %p153 = por %p151, %p152
      %p155 = scmp.ne.s32.totalorder %s138, %s154
      %p156 = scmp.eq.s32.totalorder %s20, 0
      %p157 = por %p155, %p156
      %p158 = scmp.le.s32.totalorder 1, %s14
      %p159 = scmp.lt.s32.totalorder %s14, 3
      %p160 = pnand %p158, %p159
      %p161 = pneg %p160
      // Predicated region
      $region9: #{tpu_custom_call.1} parent=5 // pred_check
        _
      $region10: #{tpu_custom_call.1} parent=5 // pred_check_branch
        %163 = sbr.rel (%p160) target = $region12
      $region11: #{tpu_custom_call.1} parent=5 // pred_region
        %s164 = ssub.s32 %s14, 1
        // Predicated region
        $region13: #{tpu_custom_call.1} parent=11 // pred_check
          %p165 = pneg %p61
        $region14: #{tpu_custom_call.1} parent=11 // pred_check_branch
          %167 = sbr.rel (%p165) target = $region16
        $region15: #{tpu_custom_call.1} parent=11 // pred_region
          _
        $region16: #{tpu_custom_call.1} parent=11 // pred_fallthru
          _
        // Predicated region
        $region17: #{tpu_custom_call.1} parent=11 // pred_check
          %p168 = pneg %p82
        $region18: #{tpu_custom_call.1} parent=11 // pred_check_branch
          %170 = sbr.rel (%p168) target = $region20
        $region19: #{tpu_custom_call.1} parent=11 // pred_region
          _
        $region20: #{tpu_custom_call.1} parent=11 // pred_fallthru
          _
        // Predicated region
        $region21: #{tpu_custom_call.1} parent=11 // pred_check
          %p171 = pneg %p103
        $region22: #{tpu_custom_call.1} parent=11 // pred_check_branch
          %173 = sbr.rel (%p171) target = $region24
        $region23: #{tpu_custom_call.1} parent=11 // pred_region
          _
        $region24: #{tpu_custom_call.1} parent=11 // pred_fallthru
          _
        // Predicated region
        $region25: #{tpu_custom_call.1} parent=11 // pred_check
          %p174 = pneg %p124
        $region26: #{tpu_custom_call.1} parent=11 // pred_check_branch
          %176 = sbr.rel (%p174) target = $region28
        $region27: #{tpu_custom_call.1} parent=11 // pred_region
          _
        $region28: #{tpu_custom_call.1} parent=11 // pred_fallthru
          _
      $region12: #{tpu_custom_call.1} parent=5 // pred_fallthru
        _
      %p177 = scmp.lt.s32.totalorder %s14, 2
      // Predicated region
      $region29: #{tpu_custom_call.1} parent=5 // pred_check
        %p178 = pneg %p177
      $region30: #{tpu_custom_call.1} parent=5 // pred_check_branch
        %180 = sbr.rel (%p178) target = $region32
      $region31: #{tpu_custom_call.1} parent=5 // pred_region
        // Predicated region
        $region33: #{tpu_custom_call.1} parent=31 // pred_check
          %p181 = pneg %p34
        $region34: #{tpu_custom_call.1} parent=31 // pred_check_branch
          %183 = sbr.rel (%p181) target = $region36
        $region35: #{tpu_custom_call.1} parent=31 // pred_region
          %s184 = smul.u32 2, %s14
          %p185 = scmp.lt.s32.totalorder %s184, 3
          %s186 = scalar_select %p185, %s184, 3
          %s187 = smul.addr %s186, 4
          %s188 = scalar_lea.vmem %s0, %s187
          %s189 = smul.u32 2, %s14
        $region36: #{tpu_custom_call.1} parent=31 // pred_fallthru
          _
      $region32: #{tpu_custom_call.1} parent=5 // pred_fallthru
        _
      %p190 = scmp.le.s32.totalorder 1, %s14
      %p191 = scmp.lt.s32.totalorder %s14, 3
      %p192 = pnand %p190, %p191
      %p193 = pneg %p192
      // Predicated region
      $region37: #{tpu_custom_call.1} parent=5 // pred_check
        _
      $region38: #{tpu_custom_call.1} parent=5 // pred_check_branch
        %195 = sbr.rel (%p192) target = $region40
      $region39: #{tpu_custom_call.1} parent=5 // pred_region
        %s196 = ssub.s32 %s14, 1
        %s197 = smul.u32 2, %s19
        %p198 = scmp.lt.s32.totalorder %s197, 3
        %s199 = scalar_select %p198, %s197, 3
        %s200 = smul.addr %s199, 4
        %s201 = scalar_lea.vmem %s0, %s200
        %p202 = pneg %p40
        %p203 = pneg %p37
        %p204 = pneg %p61
        %p205 = pneg %p58
        %p206 = pneg %p82
        %p207 = pneg %p79
        %p208 = pneg %p103
        %p209 = pneg %p100
        %p210 = pneg %p124
        %p211 = pneg %p121
        %p212 = pneg %p150
        %p213 = pneg %p147
        %s214 = sand.u32 %s137, 1
        %s215 = scalar_lea.sflag [#allocation3], %s214
        %s216 = sand.u32 %s137, 1
        %s217 = smul.addr %s216, 16
        %s218 = scalar_lea.vmem [#allocation2], %s217
        %s219 = smul.u32 2, %s19
        %p220 = scmp.lt.s32.totalorder %s219, 3
        %s221 = scalar_select %p220, %s219, 3
        %s222 = smul.addr %s221, 4
        %s223 = scalar_lea.vmem %s0, %s222
        %s224 = smul.u32 2, %s19
        %s225 = smul.u32 2, %s19
        %v227 = vld [vmem:[%s223] sm:$0xf]
        %v228 = vld [vmem:[%s223 + $0x4] sm:$0xf]
        %v229 = vld [vmem:[%s1] sm:$0xf]
        %v230 = vld [vmem:[%s1 + $0x4] sm:$0xf]
        %v231 = vld [vmem:[%s1 + $0x8] sm:$0xf]
        %v232 = vld [vmem:[%s1 + $0xc] sm:$0xf]
        %v233 = vld [vmem:[%s1 + $0x10] sm:$0xf]
        %v234 = vld [vmem:[%s1 + $0x14] sm:$0xf]
        %v235 = vld [vmem:[%s1 + $0x18] sm:$0xf]
        %v236 = vld [vmem:[%s1 + $0x1c] sm:$0xf]
        %v237 = vld [vmem:[%s2] sm:$0x1]
        %v239 = vlaneseq
        %v240 = vshrl.u32 %v239, 7
        %v241 = vsub.s32 0, %v240
        %v242 = vrot.slane %v237, %v241
        %v246 = vunpack.c.l.b16 %v227
        %v247 = vunpack.c.l.b16 %v228
        %v248 = vpack.c.b16 %v247, %v246
        %v257 = vunpack.c.l.b16 %v229
        %v258 = vunpack.c.l.b16 %v230
        %v259 = vunpack.c.l.b16 %v231
        %v260 = vunpack.c.l.b16 %v232
        %v261 = vunpack.c.l.b16 %v233
        %v262 = vunpack.c.l.b16 %v234
        %v263 = vunpack.c.l.b16 %v235
        %v264 = vunpack.c.l.b16 %v236
        %v265 = vpack.c.b16 %v258, %v257
        %v266 = vpack.c.b16 %v260, %v259
        %v267 = vpack.c.b16 %v262, %v261
        %v268 = vpack.c.b16 %v264, %v263
        %vm273 = vcmask 523264
        %v275 = vsel %vm273, %v248, 0
        %277 = vmatprep.subr.bf16.mxu0 0
        %278 = vmatpush1.bf16.msra.mxu0 %v265
        %279 = vmatprep.subr.bf16.mxu0 0
        %280 = vmatpush1.bf16.msra.mxu0 %v266
        %281 = vmatprep.subr.bf16.mxu0 0
        %282 = vmatpush1.bf16.msra.mxu0 %v267
        %283 = vmatprep.subr.bf16.mxu0 0
        %284 = vmatpush1.bf16.msra.mxu0 %v268
        %285 = vmatprep.subr.bf16.mxu0 0
        %286 = vmatpush1.bf16.msra.mxu0 0
        %287 = vmatprep.subr.bf16.mxu0 0
        %288 = vmatpush1.bf16.msra.mxu0 0
        %289 = vmatprep.subr.bf16.mxu0 0
        %290 = vmatpush1.bf16.msra.mxu0 0
        %291 = vmatprep.subr.bf16.mxu0 0
        %292 = vmatpush1.bf16.msra.mxu0 0
        %293 = vmatprep.subr.bf16.mxu0 0
        %294 = vmatpush1.bf16.msra.mxu0 0
        %295 = vmatprep.subr.bf16.mxu0 0
        %296 = vmatpush1.bf16.msra.mxu0 0
        %297 = vmatprep.subr.bf16.mxu0 0
        %298 = vmatpush1.bf16.msra.mxu0 0
        %299 = vmatprep.subr.bf16.mxu0 0
        %300 = vmatpush1.bf16.msra.mxu0 0
        %301 = vmatprep.subr.bf16.mxu0 0
        %302 = vmatpush1.bf16.msra.mxu0 0
        %303 = vmatprep.subr.bf16.mxu0 0
        %304 = vmatpush1.bf16.msra.mxu0 0
        %305 = vmatprep.subr.bf16.mxu0 0
        %306 = vmatpush1.bf16.msra.mxu0 0
        %307 = vmatprep.subr.bf16.mxu0 0
        %308 = vmatpush1.bf16.msra.mxu0 0
        %309 = vmatprep.mubr.bf16.mxu0 0
        %310 = vmatmul.mubr.bf16.gmra.mrb[0].mxu0 %v275
        %v311 = vpop.f32.mrb[0].mxu0
        %v312 = vadd.f32 %v242, %v311
        %v313 = vpop.f32.mrb[0].mxu0
        %v314 = vpop.f32.mrb[0].mxu0
        %v315 = vadd.f32 %v242, %v314
        %v316 = vpop.f32.mrb[0].mxu0
        %317 = vdwg.mxu0
        %vm318 = vcmask 261120
        %v319 = vsel %vm318, %v312, 0.0
        %320 = vadd.xlane.f32.xlu0 %v319
        %v321 = vpop.xlane.xlu0 %320
        %v322 = vsel %vm318, %v315, 0.0
        %323 = vadd.xlane.f32.xlu0 %v322
        %v324 = vpop.xlane.xlu0 %323
        %v325 = vmul.f32 %v321, 0.03125
        %v326 = vmul.f32 %v324, 0.03125
        %v327 = vmul.f32 %v312, %v312
        %v328 = vmul.f32 %v315, %v315
        %v329 = vsel %vm318, %v327, 0.0
        %330 = vadd.xlane.f32.xlu0 %v329
        %v331 = vpop.xlane.xlu0 %330
        %v332 = vsel %vm318, %v328, 0.0
        %333 = vadd.xlane.f32.xlu0 %v332
        %v334 = vpop.xlane.xlu0 %333
        %v335 = vmul.f32 %v331, 0.03125
        %v336 = vmul.f32 %v334, 0.03125
        %v337 = vmul.f32 %v325, %v325
        %v338 = vmul.f32 %v326, %v326
        %v339 = vsub.f32 %v335, %v337
        %v340 = vsub.f32 %v336, %v338
        %v341 = vadd.f32 %v339, 1e-05
        %v342 = vadd.f32 %v340, 1e-05
        %v343 = vrsqrt.pop %v341
        %v344 = vrsqrt.pop %v342
        %v345 = vld [vmem:[%s3] sm:$0x1]
        %v347 = vlaneseq
        %v348 = vshrl.u32 %v347, 7
        %v349 = vsub.s32 0, %v348
        %v350 = vrot.slane %v345, %v349
        %v352 = vmul.f32 %v343, %v350
        %v353 = vmul.f32 %v344, %v350
        %v354 = vmul.f32 %v312, %v352
        %v355 = vmul.f32 %v315, %v353
        %v356 = vld [vmem:[%s4] sm:$0x1]
        %v357 = vmul.f32 %v325, %v352
        %v358 = vmul.f32 %v326, %v353
        %v360 = vlaneseq
        %v361 = vshrl.u32 %v360, 7
        %v362 = vsub.s32 0, %v361
        %v363 = vrot.slane %v356, %v362
        %v365 = vsub.f32 %v363, %v357
        %v366 = vsub.f32 %v363, %v358
        %v367 = vadd.f32 %v354, %v365
        %v368 = vadd.f32 %v355, %v366
        %369 = vst.msk [vmem:[%s218] sm:$0xff] %vm318, %v367
        %370 = vst.msk [vmem:[%s218 + $0x8] sm:$0xff] %vm318, %v368
        %s371 = sand.u32 %s137, 1
        %s372 = scalar_lea.sflag [#allocation3], %s371
        %s373 = sand.u32 %s137, 1
        %s374 = smul.addr %s373, 16
        %s375 = scalar_lea.vmem [#allocation2], %s374
        // Predicated region
        $region41: #{tpu_custom_call.1} parent=39 // pred_check
          %p376 = pneg %p147
        $region42: #{tpu_custom_call.1} parent=39 // pred_check_branch
          %378 = sbr.rel (%p376) target = $region44
        $region43: #{tpu_custom_call.1} parent=39 // pred_region
          %s379 = smul.u32 2, %s19
          %s381 = ssub.s32 256, 256
          %382 = vsyncadd %s372, %s381
          %s383 = smul.addr %s379, 128
          %s384 = scalar_lea.hbm %s5, %s383
          %s385 = sshll.u32 %s375, 4
          %s386 = int_to_ptr.vmem [resolvable:$true] %s385
          %391 = dma.vmem_to_hbm [thread:$0]  %s386, 256, %s384, %s372, 128, 128, 8
        $region44: #{tpu_custom_call.1} parent=39 // pred_fallthru
          _
      $region40: #{tpu_custom_call.1} parent=5 // pred_fallthru
        _
      %p392 = scmp.le.s32.totalorder 2, %s14
      // Predicated region
      $region45: #{tpu_custom_call.1} parent=5 // pred_check
        %p393 = pneg %p392
      $region46: #{tpu_custom_call.1} parent=5 // pred_check_branch
        %395 = sbr.rel (%p393) target = $region48
      $region47: #{tpu_custom_call.1} parent=5 // pred_region
        %s396 = ssub.s32 %s14, 2
        // Predicated region
        $region49: #{tpu_custom_call.1} parent=47 // pred_check
          %p397 = pneg %p153
        $region50: #{tpu_custom_call.1} parent=47 // pred_check_branch
          %399 = sbr.rel (%p397) target = $region52
        $region51: #{tpu_custom_call.1} parent=47 // pred_region
          %s400 = sand.u32 %s138, 1
          %s401 = scalar_lea.sflag [#allocation3], %s400
          %s402 = sand.u32 %s138, 1
          %s403 = smul.addr %s402, 16
          %s404 = scalar_lea.vmem [#allocation2], %s403
          %405 = dma.done %s401, 256
        $region52: #{tpu_custom_call.1} parent=47 // pred_fallthru
          _
      $region48: #{tpu_custom_call.1} parent=5 // pred_fallthru
        _
    $region6: #{tpu_custom_call.1} parent=1 // loop_footer
      %s18 = sadd.s32 1, %s14
    $region7: #{tpu_custom_call.1} parent=1 // loop_footer_branch
      %13 = sbr.rel target = $region3
    $region8: #{tpu_custom_call.1} parent=1 // loop_exit
      _
    %406 = vsyncpa [#allocation3], 1
    %s407 = scalar_lea.sflag [#allocation3], 1
    %408 = vsyncpa %s407, 1

</llo_original>
